<compile_context>
chip_gen: v6e
topology: v6e:2x2x1
jax: 0.10.0
libtpu: 0.0.40
codegen_flags: <defaults>
</compile_context>

<pallas_src>
import functools

import jax
import jax.numpy as jnp
from jax.experimental import pallas as pl
from jax.experimental.pallas import tpu as pltpu

LANES = 128
# ~4 MiB per input tile per pipeline buffer -> 2 inputs x 2 buffers = 16 MiB.
TARGET_TILE_BYTES = 4 * 1024 * 1024
# In-kernel compute chunk (keeps elementwise intermediates at ~0.5 MiB).
CHUNK_ROWS = 1024
VMEM_LIMIT_BYTES = 32 * 1024 * 1024  # >= v5e need, == v6e/v7x scoped default.


def _mse_kernel(x_ref, y_ref, o_ref, acc_ref, *, rows, row_tile, chunk_rows,
                n_chunks, tiles_per_shard, full_tiles, inv_n, need_mask):
    c = pl.program_id(0)   # shard (TensorCore) axis
    i = pl.program_id(1)   # reduction axis within this shard

    @pl.when(i == 0)
    def _():
        acc_ref[...] = jnp.zeros_like(acc_ref)

    def chunk_accum(start, masked, global_tile):
        xs = x_ref[pl.ds(start, chunk_rows), :].astype(jnp.float32)
        ys = y_ref[pl.ds(start, chunk_rows), :].astype(jnp.float32)
        d = xs - ys
        if masked:
            # Zero rows past the true row count: covers the partial boundary
            # tile (undefined tail) and the phantom tile of an uneven shard
            # (duplicated data).  Select before squaring so garbage/NaN cannot
            # leak into the accumulator.
            ridx = (global_tile * row_tile + start
                    + jax.lax.broadcasted_iota(jnp.int32, d.shape, 0))
            d = jnp.where(ridx < rows, d, 0.0)
        sq = d * d
        if chunk_rows % 8 == 0:
            # Pure VALU fold of the (chunk, 128) tile into one (8, 128) vreg.
            acc_ref[...] += jnp.sum(sq.reshape(chunk_rows // 8, 8, LANES), axis=0)
        else:
            # Tiny single-block case whose row count is not a multiple of 8
            # (grid is (1, 1) here by construction).
            acc_ref[0:1, :] += jnp.sum(sq, axis=0, keepdims=True)

    def accum_tile(masked, global_tile):
        if n_chunks == 1:
            chunk_accum(0, masked, global_tile)
        else:
            def body(ci, carry):
                start = pl.multiple_of(ci * chunk_rows, chunk_rows)
                chunk_accum(start, masked, global_tile)
                return carry
            jax.lax.fori_loop(0, n_chunks, body, 0)

    if need_mask:
        global_tile = c * tiles_per_shard + i
        is_tail = global_tile >= full_tiles

        @pl.when(jnp.logical_not(is_tail))
        def _():
            accum_tile(False, global_tile)

        @pl.when(is_tail)
        def _():
            accum_tile(True, global_tile)
    else:
        accum_tile(False, 0)

    @pl.when(i == tiles_per_shard - 1)
    def _():
        o_ref[...] = (acc_ref[...] * inv_n).reshape(1, 8, LANES)


def mse_loss(x: jax.Array, y: jax.Array) -> jax.Array:
    """Mean squared error over all elements (== F.mse_loss default reduction)."""
    assert x.shape == y.shape, "mse_loss expects matching shapes"
    n = x.size
    out_dtype = jnp.promote_types(x.dtype, y.dtype)
    if n == 0:
        return jnp.full((), jnp.nan, dtype=out_dtype)

    xf = jnp.ravel(x)
    yf = jnp.ravel(y)

    # TODO(synk): when n % 128 != 0 this jnp.pad costs one extra HBM pass over
    # each input; a zero-copy ragged-tail path would need a 1-D block layout
    # that is not worth the lowering risk for <=127 trailing elements.
    lane_pad = (-n) % LANES
    if lane_pad:
        xf = jnp.pad(xf, (0, lane_pad))
        yf = jnp.pad(yf, (0, lane_pad))
    rows = (n + lane_pad) // LANES

    x2d = xf.reshape(rows, LANES)
    y2d = yf.reshape(rows, LANES)

    # Tile selection: ~4 MiB per input tile, scaled by the input itemsize so
    # bf16 / int8 inputs keep the same byte footprint.
    itemsize = max(jnp.dtype(x.dtype).itemsize, jnp.dtype(y.dtype).itemsize)
    cap = max(CHUNK_ROWS,
              (TARGET_TILE_BYTES // (LANES * itemsize)) // CHUNK_ROWS * CHUNK_ROWS)
    row_tile = rows if rows <= cap else cap
    n_tiles = pl.cdiv(rows, row_tile)

    # Always use two shards when there is more than one tile so v7x's two
    # TensorCores each stream ~half the data; single-TC chips just run the
    # shards back to back.  Uneven tile counts give shard 1 a clamped phantom
    # trailing block, zeroed by the row mask.
    num_shards = 2 if n_tiles >= 2 else 1
    tiles_per_shard = pl.cdiv(n_tiles, num_shards)
    has_phantom = num_shards * tiles_per_shard != n_tiles
    partial_last = n_tiles * row_tile != rows
    need_mask = has_phantom or partial_last
    full_tiles = rows // row_tile  # tiles that are entirely in-bounds

    chunk_rows = CHUNK_ROWS if (row_tile % CHUNK_ROWS == 0) else row_tile
    n_chunks = row_tile // chunk_rows

    kernel = functools.partial(
        _mse_kernel,
        rows=rows,
        row_tile=row_tile,
        chunk_rows=chunk_rows,
        n_chunks=n_chunks,
        tiles_per_shard=tiles_per_shard,
        full_tiles=full_tiles,
        inv_n=float(1.0 / n),
        need_mask=need_mask,
    )

    last_tile = n_tiles - 1

    def in_map(c, i):
        g = c * tiles_per_shard + i
        if has_phantom:
            g = jnp.minimum(g, last_tile)  # phantom block re-reads the last tile
        return (g, 0)

    partials = pl.pallas_call(
        kernel,
        out_shape=jax.ShapeDtypeStruct((num_shards, 8, LANES), jnp.float32),
        grid_spec=pltpu.PrefetchScalarGridSpec(
            num_scalar_prefetch=0,
            grid=(num_shards, tiles_per_shard),
            in_specs=[
                pl.BlockSpec((row_tile, LANES), in_map),
                pl.BlockSpec((row_tile, LANES), in_map),
            ],
            out_specs=pl.BlockSpec((1, 8, LANES), lambda c, i: (c, 0, 0)),
            scratch_shapes=[pltpu.VMEM((8, LANES), jnp.float32)],
        ),
        compiler_params=pltpu.CompilerParams(
            dimension_semantics=("parallel", "arbitrary"),
            vmem_limit_bytes=VMEM_LIMIT_BYTES,
        ),
    )(x2d, y2d)

    # Tiny final reduce (num_shards * 8 * 128 elements) done by XLA.
    return jnp.sum(partials).astype(out_dtype)


if __name__ == "__main__":
    key = jax.random.PRNGKey(0)
    kx, ky = jax.random.split(key)
    # Small NCHW-like shapes consistent with a typical use of this loss.
    x = jax.random.normal(kx, (2, 4, 16, 16), dtype=jnp.float32)
    y = jax.random.normal(ky, (2, 4, 16, 16), dtype=jnp.float32)

    loss = mse_loss(x, y)
    jax.block_until_ready(loss)

    # Reference check (plain JAX)
    ref = jnp.mean((x - y) ** 2)
    assert jnp.allclose(loss, ref, rtol=1e-5, atol=1e-6), (loss, ref)

    print("KERNEL_OK")
</pallas_src>

<mosaic_0001>
module attributes {stable_mosaic.version = 11 : i64} {
  func.func @_mse_kernel(%arg0: i32, %arg1: i32, %arg2: memref<16x128xf32, #tpu.memory_space<vmem>>, %arg3: memref<16x128xf32, #tpu.memory_space<vmem>>, %arg4: memref<1x8x128xf32, #tpu.memory_space<vmem>>, %arg5: memref<8x128xf32, #tpu.memory_space<vmem>>) attributes {dimension_semantics = [#tpu.dimension_semantics<parallel>, #tpu.dimension_semantics<arbitrary>], iteration_bounds = array<i64: 1, 1>, scalar_prefetch = 0 : i64, scratch_operands = 1 : i64, tpu.core_type = #tpu.core_type<tc>, window_params = [{transform_indices = @transform_0, window_bounds = array<i64: 16, 128>}, {transform_indices = @transform_1, window_bounds = array<i64: 16, 128>}, {transform_indices = @transform_2, window_bounds = array<i64: 1, 8, 128>}]} {
    %c0_i32 = arith.constant 0 : i32
    %0 = arith.cmpi eq, %arg1, %c0_i32 : i32
    %1 = arith.extui %0 : i1 to i32
    %c0_i32_0 = arith.constant 0 : i32
    %2 = arith.cmpi ne, %1, %c0_i32_0 : i32
    scf.if %2 {
      %cst_10 = arith.constant 0.000000e+00 : f32
      %15 = vector.broadcast %cst_10 : f32 to vector<8x128xf32>
      %c0_11 = arith.constant 0 : index
      %c0_12 = arith.constant 0 : index
      %16 = vector.load %arg5[%c0_11, %c0_12] : memref<8x128xf32, #tpu.memory_space<vmem>>, vector<8x128xf32>
      tpu.vector_store %arg5[%c0_11, %c0_12], %15 {strides = array<i32>} : memref<8x128xf32, #tpu.memory_space<vmem>>, vector<8x128xf32>,
    } else {
    }
    %c0 = arith.constant 0 : index
    %c0_1 = arith.constant 0 : index
    %3 = vector.load %arg2[%c0, %c0_1] : memref<16x128xf32, #tpu.memory_space<vmem>>, vector<16x128xf32>
    %c0_2 = arith.constant 0 : index
    %c0_3 = arith.constant 0 : index
    %4 = vector.load %arg3[%c0_2, %c0_3] : memref<16x128xf32, #tpu.memory_space<vmem>>, vector<16x128xf32>
    %5 = arith.subf %3, %4 : vector<16x128xf32>
    %6 = arith.mulf %5, %5 : vector<16x128xf32>
    %c0_4 = arith.constant 0 : index
    %c0_5 = arith.constant 0 : index
    %7 = vector.load %arg5[%c0_4, %c0_5] : memref<8x128xf32, #tpu.memory_space<vmem>>, vector<8x128xf32>
    %8 = vector.shape_cast %6 : vector<16x128xf32> to vector<2x8x128xf32>
    %cst = arith.constant dense<0.000000e+00> : vector<8x128xf32>
    %9 = vector.multi_reduction <add>, %8, %cst [0] : vector<2x8x128xf32> to vector<8x128xf32>
    %10 = arith.addf %7, %9 : vector<8x128xf32>
    %c0_6 = arith.constant 0 : index
    %c0_7 = arith.constant 0 : index
    %11 = vector.load %arg5[%c0_6, %c0_7] : memref<8x128xf32, #tpu.memory_space<vmem>>, vector<8x128xf32>
    tpu.vector_store %arg5[%c0_6, %c0_7], %10 {strides = array<i32>} : memref<8x128xf32, #tpu.memory_space<vmem>>, vector<8x128xf32>,
    %c0_i32_8 = arith.constant 0 : i32
    %12 = arith.cmpi eq, %arg1, %c0_i32_8 : i32
    %13 = arith.extui %12 : i1 to i32
    %c0_i32_9 = arith.constant 0 : i32
    %14 = arith.cmpi ne, %13, %c0_i32_9 : i32
    scf.if %14 {
      %c0_10 = arith.constant 0 : index
      %c0_11 = arith.constant 0 : index
      %15 = vector.load %arg5[%c0_10, %c0_11] : memref<8x128xf32, #tpu.memory_space<vmem>>, vector<8x128xf32>
      %cst_12 = arith.constant 4.8828125E-4 : f32
      %16 = vector.broadcast %cst_12 : f32 to vector<8x128xf32>
      %17 = arith.mulf %15, %16 : vector<8x128xf32>
      %18 = vector.shape_cast %17 : vector<8x128xf32> to vector<1x8x128xf32>
      %c0_13 = arith.constant 0 : index
      %c0_14 = arith.constant 0 : index
      %c0_15 = arith.constant 0 : index
      %19 = vector.load %arg4[%c0_13, %c0_14, %c0_15] : memref<1x8x128xf32, #tpu.memory_space<vmem>>, vector<1x8x128xf32>
      tpu.vector_store %arg4[%c0_13, %c0_14, %c0_15], %18 {strides = array<i32>} : memref<1x8x128xf32, #tpu.memory_space<vmem>>, vector<1x8x128xf32>,
    } else {
    }
    return
  }
  func.func @transform_0(%arg0: i32, %arg1: i32) -> (i32, i32) {
    %c1_i32 = arith.constant 1 : i32
    %0 = arith.muli %arg0, %c1_i32 : i32
    %1 = arith.addi %0, %arg1 : i32
    %c0_i32 = arith.constant 0 : i32
    %c0_i32_0 = arith.constant 0 : i32
    return %1, %c0_i32 : i32, i32
  }
  func.func @transform_1(%arg0: i32, %arg1: i32) -> (i32, i32) {
    %c1_i32 = arith.constant 1 : i32
    %0 = arith.muli %arg0, %c1_i32 : i32
    %1 = arith.addi %0, %arg1 : i32
    %c0_i32 = arith.constant 0 : i32
    %c0_i32_0 = arith.constant 0 : i32
    return %1, %c0_i32 : i32, i32
  }
  func.func @transform_2(%arg0: i32, %arg1: i32) -> (i32, i32, i32) {
    %c0_i32 = arith.constant 0 : i32
    %c0_i32_0 = arith.constant 0 : i32
    %c0_i32_1 = arith.constant 0 : i32
    return %arg0, %c0_i32, %c0_i32_0 : i32, i32, i32
  }
}

</mosaic_0001>

<llo_original>
// kernel: tpu_custom_call.1
$region0: #{tpu_custom_call.1}
  #allocation0 [shape = 'u32[]', space=smem, size = 0x4, offset = 0x4, fixed_abs, tag = 'smem constant byte address 0x4 - core index']
  #allocation1 [shape = 'u32[144,128]{1,0:T(1,128)}', space=vmem, size = 0x12000, scoped, tag = 'internal scratch']
  #allocation2 [shape = 'f32[8,128]{1,0:T(8,128)}', space=vmem, size = 0x1000, scoped, tag = 'scratch operand']
  %s0 = inlined_call_operand.hbm [shape: f32[16,128], index: 0, kind: input, shape index: {}]
  %s1 = inlined_call_operand.hbm [shape: f32[16,128], index: 1, kind: input, shape index: {}]
  %s2 = inlined_call_operand.hbm [shape: f32[1,8,128], index: 2, kind: output, shape index: {}]
  %s3 = sld [smem:[#allocation0]]
  $region34: #{tpu_custom_call.1} parent=0
    _
  %s5 = ssub.s32 1, %s3
  %s6 = scalar_select 0, %s5, %s3
  $region1: #{tpu_custom_call.1} parent=0
    #allocation3 [shape = 'u8[8192]{0}', space=vmem, size = 0x2000, scoped, tag = 'input window, operand 0, single buffered']
    #allocation4 [shape = 's32[1]{0}', space=sflag, size = 0x4, scoped, tag = 'scoped memory for tpu_custom_call.1']
    #allocation5 [shape = 's32[1]{0}', space=sflag, size = 0x4, scoped, tag = 'scoped memory for tpu_custom_call.1']
    #allocation6 [shape = 'u8[8192]{0}', space=vmem, size = 0x2000, scoped, tag = 'input window, operand 1, single buffered']
    #allocation7 [shape = 's32[1]{0}', space=sflag, size = 0x4, scoped, tag = 'scoped memory for tpu_custom_call.1']
    #allocation8 [shape = 'u8[4096]{0}', space=vmem, size = 0x1000, scoped, tag = 'output window, operand 0, single buffered']
    %7 = vsyncpa [#allocation4], 0
    %8 = vsyncpa [#allocation7], 0
    %9 = vsyncpa [#allocation5], 0
    // Predicated region
    $region2: #{tpu_custom_call.1} parent=1 // pred_check
      _
    $region3: #{tpu_custom_call.1} parent=1 // pred_check_branch
      %11 = sbr.rel (0) target = $region5
    $region4: #{tpu_custom_call.1} parent=1 // pred_region
      %s12 = sadd.s32 0, 0
      %s13 = smul.u32 2, %s12
      %s15 = ssub.s32 256, 256
      %16 = vsyncadd [#allocation4], %s15
      %s17 = smul.addr %s13, 128
      %s18 = scalar_lea.hbm %s0, %s17
      %s19 = sshll.u32 [#allocation3], 4
      %s20 = int_to_ptr.vmem [resolvable:$true] %s19
      %25 = dma.hbm_to_vmem [thread:$0]  %s18, 256, %s20, [#allocation4], 128, 128, 8
    $region5: #{tpu_custom_call.1} parent=1 // pred_fallthru
      _
    // Predicated region
    $region6: #{tpu_custom_call.1} parent=1 // pred_check
      _
    $region7: #{tpu_custom_call.1} parent=1 // pred_check_branch
      %27 = sbr.rel (0) target = $region9
    $region8: #{tpu_custom_call.1} parent=1 // pred_region
      %s28 = sadd.s32 0, 0
      %s29 = smul.u32 2, %s28
      %s31 = ssub.s32 256, 256
      %32 = vsyncadd [#allocation7], %s31
      %s33 = smul.addr %s29, 128
      %s34 = scalar_lea.hbm %s1, %s33
      %s35 = sshll.u32 [#allocation6], 4
      %s36 = int_to_ptr.vmem [resolvable:$true] %s35
      %41 = dma.hbm_to_vmem [thread:$0]  %s34, 256, %s36, [#allocation7], 128, 128, 8
    $region9: #{tpu_custom_call.1} parent=1 // pred_fallthru
      _
    // Predicated region
    $region10: #{tpu_custom_call.1} parent=1 // pred_check
      _
    $region11: #{tpu_custom_call.1} parent=1 // pred_check_branch
      %43 = sbr.rel (0) target = $region13
    $region12: #{tpu_custom_call.1} parent=1 // pred_region
      %44 = dma.done [#allocation4], 256
    $region13: #{tpu_custom_call.1} parent=1 // pred_fallthru
      _
    // Predicated region
    $region14: #{tpu_custom_call.1} parent=1 // pred_check
      _
    $region15: #{tpu_custom_call.1} parent=1 // pred_check_branch
      %46 = sbr.rel (0) target = $region17
    $region16: #{tpu_custom_call.1} parent=1 // pred_region
      %47 = dma.done [#allocation7], 256
    $region17: #{tpu_custom_call.1} parent=1 // pred_fallthru
      _
    %s48 = sadd.s32 0, 0
    %s49 = smul.u32 2, %s48
    %s50 = sadd.s32 0, 0
    %s51 = smul.u32 2, %s50
    %p52 = scmp.eq.s32.totalorder 0, 0
    // Predicated region
    $region18: #{tpu_custom_call.1} parent=1 // pred_check
      %p53 = pneg %p52
    $region19: #{tpu_custom_call.1} parent=1 // pred_check_branch
      %55 = sbr.rel (%p53) target = $region21
    $region20: #{tpu_custom_call.1} parent=1 // pred_region
      %56 = vst [vmem:[#allocation2] sm:$0xff] 0.0
    $region21: #{tpu_custom_call.1} parent=1 // pred_fallthru
      _
    %v57 = vld [vmem:[#allocation3] sm:$0xff]
    %v58 = vld [vmem:[#allocation3 + $0x8] sm:$0xff]
    %v59 = vld [vmem:[#allocation6] sm:$0xff]
    %v60 = vld [vmem:[#allocation6 + $0x8] sm:$0xff]
    %v61 = vsub.f32 %v57, %v59
    %v62 = vsub.f32 %v58, %v60
    %v63 = vmul.f32 %v61, %v61
    %v64 = vmul.f32 %v62, %v62
    %v65 = vld [vmem:[#allocation2] sm:$0xff]
    %v66 = vadd.f32 %v63, %v64
    %v67 = vadd.f32 %v65, %v66
    %68 = vst [vmem:[#allocation2] sm:$0xff] %v67
    // Predicated region
    $region22: #{tpu_custom_call.1} parent=1 // pred_check
      %p69 = pneg %p52
    $region23: #{tpu_custom_call.1} parent=1 // pred_check_branch
      %71 = sbr.rel (%p69) target = $region25
    $region24: #{tpu_custom_call.1} parent=1 // pred_region
      %v72 = vld [vmem:[#allocation2] sm:$0xff]
      %v73 = vmul.f32 %v72, 0.00048828125
      %74 = vst [vmem:[#allocation8] sm:$0xff] %v73
    $region25: #{tpu_custom_call.1} parent=1 // pred_fallthru
      _
    // Predicated region
    $region26: #{tpu_custom_call.1} parent=1 // pred_check
      _
    $region27: #{tpu_custom_call.1} parent=1 // pred_check_branch
      %76 = sbr.rel (0) target = $region29
    $region28: #{tpu_custom_call.1} parent=1 // pred_region
      %s78 = ssub.s32 128, 128
      %79 = vsyncadd [#allocation5], %s78
      %s81 = sshll.u32 [#allocation8], 4
      %s82 = int_to_ptr.vmem [resolvable:$true] %s81
      %84 = dma.vmem_to_hbm [thread:$0]  %s82, 128, %s2, [#allocation5]
    $region29: #{tpu_custom_call.1} parent=1 // pred_fallthru
      _
    // Predicated region
    $region30: #{tpu_custom_call.1} parent=1 // pred_check
      _
    $region31: #{tpu_custom_call.1} parent=1 // pred_check_branch
      %86 = sbr.rel (0) target = $region33
    $region32: #{tpu_custom_call.1} parent=1 // pred_region
      %87 = dma.done [#allocation5], 128
    $region33: #{tpu_custom_call.1} parent=1 // pred_fallthru
      _
    %88 = vsyncpa [#allocation4], 1
    %89 = vsyncpa [#allocation7], 1
    %90 = vsyncpa [#allocation5], 1

</llo_original>
